<compile_context>
chip_gen: v6e
topology: v6e:2x2x1
jax: 0.10.0
libtpu: 0.0.40
codegen_flags: <defaults>
</compile_context>

<pallas_src>
import functools

import jax
import jax.numpy as jnp
from jax import lax
from jax.experimental import pallas as pl
from jax.experimental.pallas import tpu as pltpu


# ----------------------------------------------------------------------------
# Kernel
# ----------------------------------------------------------------------------
def critic_kernel(s_ref, w1_ref, b1_ref, w2_ref, b2_ref, w3_ref, b3_ref,
                  o_ref, *, use_tanh):
    act = jnp.tanh if use_tanh else lambda x: jnp.maximum(x, 0.0)

    # s tile (TB, D) f32 -> bf16 in-kernel (free; keeps HBM traffic f32-once).
    x = s_ref[...].astype(jnp.bfloat16)                          # (TB, D)

    # Layer 1: W1 (H, D) bf16 contracted with x on the D axis -> (H, TB) f32.
    # Batch lands on the LANE axis, so h1/h2 are lane-dense.
    h1 = act(lax.dot_general(w1_ref[...], x,
                             dimension_numbers=(((1,), (1,)), ((), ())),
                             preferred_element_type=jnp.float32)
             + b1_ref[...])                                      # (H, TB)

    # Layer 2: bf16 x bf16 MXU matmul, f32 accumulation (no per-step W2 upcast).
    h2 = act(jnp.dot(w2_ref[...], h1.astype(jnp.bfloat16),
                     preferred_element_type=jnp.float32)
             + b2_ref[...])                                      # (H, TB)

    # Value head: (1, H) @ (H, TB) -> (1, TB); already lane-dense for the store.
    v = jnp.dot(w3_ref[...], h2, preferred_element_type=jnp.float32)
    o_ref[...] = (v + b3_ref[0]).astype(o_ref.dtype)


# ----------------------------------------------------------------------------
# Wrapper
# ----------------------------------------------------------------------------
def prepare_critic_params(params):
    """f32 PyTorch-layout params -> kernel-ready params.  Do this ONCE, outside
    the training step, so no per-call weight casts are emitted."""
    w1, b1, w2, b2, w3, b3 = params
    H = w1.shape[0]
    return (w1.astype(jnp.bfloat16),                  # (H, D)  resident in VMEM
            b1.reshape(H, 1).astype(jnp.float32),     # (H, 1)
            w2.astype(jnp.bfloat16),                  # (H, H)
            b2.reshape(H, 1).astype(jnp.float32),     # (H, 1)
            w3.reshape(1, H).astype(jnp.float32),     # (1, H) head row
            b3.reshape(1).astype(jnp.float32))        # (1,)   SMEM scalar


def critic_forward(s, kparams, *, use_tanh=True, batch_tile=2048):
    """s: (B, state_dim) f32, kparams from prepare_critic_params -> (B, 1) f32."""
    w1, b1, w2, b2, w3, b3 = kparams
    B, D = s.shape
    H = w1.shape[0]
    assert batch_tile > 0 and batch_tile % 128 == 0, "batch_tile must be a multiple of 128"

    # Tile sizing: big tiles to amortize per-step overhead, but keep >= 2 grid
    # steps whenever B > 128 so the "parallel" axis can split across the two
    # TensorCores on v7x (no-op on single-TC v5e/v6e).
    units = pl.cdiv(B, 128)                       # number of 128-row units
    max_units = batch_tile // 128
    tile_units = 1 if units <= 1 else min(max_units, pl.cdiv(units, 2))
    tb = tile_units * 128
    num_tiles = pl.cdiv(B, tb)
    b_pad = num_tiles * tb

    s_in = s
    if b_pad != B:
        # Tail padding only when needed; padded rows give finite garbage that is
        # sliced away below.
        s_in = jnp.pad(s, ((0, b_pad - B), (0, 0)))

    kernel = functools.partial(critic_kernel, use_tanh=use_tanh)

    flops = 2 * b_pad * (D * H + H * H + H)
    transcendentals = (2 * b_pad * H) if use_tanh else 0
    bytes_accessed = (b_pad * D * 4 + b_pad * 4           # s (f32) + out (f32)
                      + (D * H + H * H) * 2               # W1, W2 (bf16)
                      + (3 * H + 1) * 4)                  # b1, b2, w3, b3 (f32)

    out = pl.pallas_call(
        kernel,
        out_shape=jax.ShapeDtypeStruct((1, b_pad), jnp.float32),
        grid_spec=pltpu.PrefetchScalarGridSpec(
            num_scalar_prefetch=0,
            grid=(num_tiles,),
            in_specs=[
                # s tile streams in native f32; if profiling ever shows this DMA
                # exposed, add pipeline_mode=pl.Buffered(3) here.
                pl.BlockSpec((tb, D), lambda i: (i, 0)),          # s tile
                pl.BlockSpec((H, D), lambda i: (0, 0)),           # W1 (resident)
                pl.BlockSpec((H, 1), lambda i: (0, 0)),           # b1
                pl.BlockSpec((H, H), lambda i: (0, 0)),           # W2 (resident)
                pl.BlockSpec((H, 1), lambda i: (0, 0)),           # b2
                pl.BlockSpec((1, H), lambda i: (0, 0)),           # W3 row
                pl.BlockSpec(memory_space=pltpu.MemorySpace.SMEM),  # b3 scalar
            ],
            # Lane-dense output slab: batch on the lane axis, full-width stores.
            out_specs=pl.BlockSpec((1, tb), lambda i: (0, i)),
        ),
        compiler_params=pltpu.CompilerParams(
            dimension_semantics=("parallel",)),
        cost_estimate=pl.CostEstimate(flops=flops,
                                      transcendentals=transcendentals,
                                      bytes_accessed=bytes_accessed),
    )(s_in, w1, b1, w2, b2, w3, b3)

    # (1, b_pad) lane-dense slab -> (B, 1)
    return out[0, :B].reshape(B, 1)


# ----------------------------------------------------------------------------
# Deterministic parameter init mirroring orthogonal_init(layer, gain=1.0)
# (torch.nn.init.orthogonal_ + zero bias); weights kept in PyTorch (out, in)
# layout, all f32.
# ----------------------------------------------------------------------------
def orthogonal_pt(key, out_dim, in_dim, gain=1.0):
    a = jax.random.normal(key, (max(out_dim, in_dim), min(out_dim, in_dim)),
                          dtype=jnp.float32)
    q, r = jnp.linalg.qr(a)
    q = q * jnp.sign(jnp.diag(r))[None, :]
    if out_dim < in_dim:
        q = q.T
    return gain * q[:out_dim, :in_dim]


def init_critic_params(key, state_dim, hidden_width):
    k1, k2, k3 = jax.random.split(key, 3)
    w1 = orthogonal_pt(k1, hidden_width, state_dim)        # (H, D)
    b1 = jnp.zeros((hidden_width,), jnp.float32)
    w2 = orthogonal_pt(k2, hidden_width, hidden_width)     # (H, H)
    b2 = jnp.zeros((hidden_width,), jnp.float32)
    w3 = orthogonal_pt(k3, 1, hidden_width)                # (1, H)
    b3 = jnp.zeros((1,), jnp.float32)
    return (w1, b1, w2, b2, w3, b3)


# ----------------------------------------------------------------------------
# Pure-JAX references
# ----------------------------------------------------------------------------
def critic_ref_quantized(s, params, use_tanh=True):
    """Applies the SAME bf16 quantization as the kernel (s, W1, W2, h1)."""
    w1, b1, w2, b2, w3, b3 = params
    act = jnp.tanh if use_tanh else lambda x: jnp.maximum(x, 0.0)
    f32 = lambda a: a.astype(jnp.bfloat16).astype(jnp.float32)
    x = f32(s)
    h1 = act(x @ f32(w1).T + b1)
    h1 = f32(h1)
    h2 = act(h1 @ f32(w2).T + b2)
    return h2 @ w3.T + b3


def critic_ref_f32(s, params, use_tanh=True):
    """Exact f32 forward of the PyTorch Critic (no quantization)."""
    w1, b1, w2, b2, w3, b3 = params
    act = jnp.tanh if use_tanh else lambda x: jnp.maximum(x, 0.0)
    h1 = act(s @ w1.T + b1)
    h2 = act(h1 @ w2.T + b2)
    return h2 @ w3.T + b3


if __name__ == "__main__":
    key = jax.random.PRNGKey(0)
    k_param, k_input, k_bias = jax.random.split(key, 3)

    # Small shapes; batch chosen so the grid has 2 steps and a padded tail.
    batch, state_dim, hidden_width = 200, 16, 32

    w1, _, w2, _, w3, _ = init_critic_params(k_param, state_dim, hidden_width)
    # The module initializes biases to 0; use small nonzero biases here so the
    # bias-add / SMEM-scalar paths are actually exercised by the check.
    kb1, kb2, kb3 = jax.random.split(k_bias, 3)
    params = (w1, 0.1 * jax.random.normal(kb1, (hidden_width,), jnp.float32),
              w2, 0.1 * jax.random.normal(kb2, (hidden_width,), jnp.float32),
              w3, 0.1 * jax.random.normal(kb3, (1,), jnp.float32))

    s = jax.random.normal(k_input, (batch, state_dim), dtype=jnp.float32)
    kparams = prepare_critic_params(params)

    for use_tanh in (True, False):
        v = critic_forward(s, kparams, use_tanh=use_tanh)
        v = jax.block_until_ready(v)
        assert v.shape == (batch, 1)

        v_q = critic_ref_quantized(s, params, use_tanh=use_tanh)
        assert jnp.allclose(v, v_q, atol=2e-3, rtol=2e-3), \
            "mismatch vs quantization-matched reference"

        # Documented numerical change: bf16 feed vs exact f32 module.
        v_f = critic_ref_f32(s, params, use_tanh=use_tanh)
        assert jnp.allclose(v, v_f, atol=5e-2, rtol=5e-2), \
            "too far from exact f32 reference"

    print("KERNEL_OK")
</pallas_src>

<mosaic_0001>
module attributes {stable_mosaic.version = 11 : i64} {
  func.func @critic_kernel(%arg0: i32, %arg1: memref<128x16xf32, #tpu.memory_space<vmem>>, %arg2: memref<32x16xbf16, #tpu.memory_space<vmem>>, %arg3: memref<32x1xf32, #tpu.memory_space<vmem>>, %arg4: memref<32x32xbf16, #tpu.memory_space<vmem>>, %arg5: memref<32x1xf32, #tpu.memory_space<vmem>>, %arg6: memref<1x32xf32, #tpu.memory_space<vmem>>, %arg7: memref<1xf32, #tpu.memory_space<smem>>, %arg8: memref<1x128xf32, #tpu.memory_space<vmem>>) attributes {dimension_semantics = [#tpu.dimension_semantics<parallel>], iteration_bounds = array<i64: 2>, scalar_prefetch = 0 : i64, scratch_operands = 0 : i64, tpu.core_type = #tpu.core_type<tc>, window_params = [{transform_indices = @transform_0, window_bounds = array<i64: 128, 16>}, {pipeline_mode = #tpu.pipeline_mode<synchronous>, transform_indices = @transform_1, window_bounds = array<i64: 32, 16>}, {pipeline_mode = #tpu.pipeline_mode<synchronous>, transform_indices = @transform_2, window_bounds = array<i64: 32, 1>}, {pipeline_mode = #tpu.pipeline_mode<synchronous>, transform_indices = @transform_3, window_bounds = array<i64: 32, 32>}, {pipeline_mode = #tpu.pipeline_mode<synchronous>, transform_indices = @transform_4, window_bounds = array<i64: 32, 1>}, {pipeline_mode = #tpu.pipeline_mode<synchronous>, transform_indices = @transform_5, window_bounds = array<i64: 1, 32>}, {transform_indices = @transform_6, window_bounds = array<i64: 1>}, {transform_indices = @transform_7, window_bounds = array<i64: 1, 128>}]} {
    %c0 = arith.constant 0 : index
    %c0_0 = arith.constant 0 : index
    %0 = vector.load %arg1[%c0, %c0_0] : memref<128x16xf32, #tpu.memory_space<vmem>>, vector<128x16xf32>
    %1 = arith.truncf %0 : vector<128x16xf32> to vector<128x16xbf16>
    %c0_1 = arith.constant 0 : index
    %c0_2 = arith.constant 0 : index
    %2 = vector.load %arg2[%c0_1, %c0_2] : memref<32x16xbf16, #tpu.memory_space<vmem>>, vector<32x16xbf16>
    %cst = arith.constant dense<0.000000e+00> : vector<32x128xf32>
    %3 = tpu.matmul %2, %1, %cst {dimension_numbers = #tpu.dot_dimension_numbers<[1], [1], [0], [0], [0, 0, 1, 0], [], []>} : vector<32x16xbf16>, vector<128x16xbf16>, vector<32x128xf32> -> vector<32x128xf32>
    %c0_3 = arith.constant 0 : index
    %c0_4 = arith.constant 0 : index
    %4 = vector.load %arg3[%c0_3, %c0_4] : memref<32x1xf32, #tpu.memory_space<vmem>>, vector<32x1xf32>
    %5 = vector.broadcast %4 : vector<32x1xf32> to vector<32x128xf32>
    %6 = arith.addf %3, %5 : vector<32x128xf32>
    %7 = math.tanh %6 : vector<32x128xf32>
    %c0_5 = arith.constant 0 : index
    %c0_6 = arith.constant 0 : index
    %8 = vector.load %arg4[%c0_5, %c0_6] : memref<32x32xbf16, #tpu.memory_space<vmem>>, vector<32x32xbf16>
    %9 = arith.truncf %7 : vector<32x128xf32> to vector<32x128xbf16>
    %cst_7 = arith.constant dense<0.000000e+00> : vector<32x128xf32>
    %10 = tpu.matmul %8, %9, %cst_7 {dimension_numbers = #tpu.dot_dimension_numbers<[1], [0], [0], [1], [0, 0, 1, 1], [], []>} : vector<32x32xbf16>, vector<32x128xbf16>, vector<32x128xf32> -> vector<32x128xf32>
    %c0_8 = arith.constant 0 : index
    %c0_9 = arith.constant 0 : index
    %11 = vector.load %arg5[%c0_8, %c0_9] : memref<32x1xf32, #tpu.memory_space<vmem>>, vector<32x1xf32>
    %12 = vector.broadcast %11 : vector<32x1xf32> to vector<32x128xf32>
    %13 = arith.addf %10, %12 : vector<32x128xf32>
    %14 = math.tanh %13 : vector<32x128xf32>
    %c0_10 = arith.constant 0 : index
    %c0_11 = arith.constant 0 : index
    %15 = vector.load %arg6[%c0_10, %c0_11] : memref<1x32xf32, #tpu.memory_space<vmem>>, vector<1x32xf32>
    %cst_12 = arith.constant dense<0.000000e+00> : vector<1x128xf32>
    %16 = tpu.matmul %15, %14, %cst_12 {dimension_numbers = #tpu.dot_dimension_numbers<[1], [0], [0], [1], [0, 0, 1, 1], [], []>} : vector<1x32xf32>, vector<32x128xf32>, vector<1x128xf32> -> vector<1x128xf32>
    %c0_13 = arith.constant 0 : index
    %17 = memref.load %arg7[%c0_13] : memref<1xf32, #tpu.memory_space<smem>>
    %18 = vector.broadcast %17 : f32 to vector<1x128xf32>
    %19 = arith.addf %16, %18 : vector<1x128xf32>
    %c0_14 = arith.constant 0 : index
    %c0_15 = arith.constant 0 : index
    %20 = vector.load %arg8[%c0_14, %c0_15] : memref<1x128xf32, #tpu.memory_space<vmem>>, vector<1x128xf32>
    tpu.vector_store %arg8[%c0_14, %c0_15], %19 {strides = array<i32>} : memref<1x128xf32, #tpu.memory_space<vmem>>, vector<1x128xf32>,
    return
  }
  func.func @transform_0(%arg0: i32) -> (i32, i32) {
    %c0_i32 = arith.constant 0 : i32
    %c0_i32_0 = arith.constant 0 : i32
    return %arg0, %c0_i32 : i32, i32
  }
  func.func @transform_1(%arg0: i32) -> (i32, i32) {
    %c0_i32 = arith.constant 0 : i32
    %c0_i32_0 = arith.constant 0 : i32
    %c0_i32_1 = arith.constant 0 : i32
    return %c0_i32, %c0_i32_0 : i32, i32
  }
  func.func @transform_2(%arg0: i32) -> (i32, i32) {
    %c0_i32 = arith.constant 0 : i32
    %c0_i32_0 = arith.constant 0 : i32
    %c0_i32_1 = arith.constant 0 : i32
    return %c0_i32, %c0_i32_0 : i32, i32
  }
  func.func @transform_3(%arg0: i32) -> (i32, i32) {
    %c0_i32 = arith.constant 0 : i32
    %c0_i32_0 = arith.constant 0 : i32
    %c0_i32_1 = arith.constant 0 : i32
    return %c0_i32, %c0_i32_0 : i32, i32
  }
  func.func @transform_4(%arg0: i32) -> (i32, i32) {
    %c0_i32 = arith.constant 0 : i32
    %c0_i32_0 = arith.constant 0 : i32
    %c0_i32_1 = arith.constant 0 : i32
    return %c0_i32, %c0_i32_0 : i32, i32
  }
  func.func @transform_5(%arg0: i32) -> (i32, i32) {
    %c0_i32 = arith.constant 0 : i32
    %c0_i32_0 = arith.constant 0 : i32
    %c0_i32_1 = arith.constant 0 : i32
    return %c0_i32, %c0_i32_0 : i32, i32
  }
  func.func @transform_6(%arg0: i32) -> i32 {
    %c0_i32 = arith.constant 0 : i32
    %c0_i32_0 = arith.constant 0 : i32
    return %c0_i32 : i32
  }
  func.func @transform_7(%arg0: i32) -> (i32, i32) {
    %c0_i32 = arith.constant 0 : i32
    %c0_i32_0 = arith.constant 0 : i32
    return %c0_i32, %arg0 : i32, i32
  }
}

</mosaic_0001>

<llo_original>
// kernel: tpu_custom_call.1
$region0: #{tpu_custom_call.1}
  #allocation0 [shape = 'u32[]', space=smem, size = 0x4, offset = 0x4, fixed_abs, tag = 'smem constant byte address 0x4 - core index']
  #allocation1 [shape = 'u32[144,128]{1,0:T(1,128)}', space=vmem, size = 0x12000, scoped, tag = 'internal scratch']
  #allocation2 [shape = 'f32[1]{0:T(128)S(6)}', space=smem, size = 0x200, scoped, tag = 'scoped memory for tpu_custom_call.1']
  %s0 = inlined_call_operand.vmem [shape: f32[256,16], index: 0, kind: input, shape index: {}]
  %s1 = inlined_call_operand.vmem [shape: bf16[32,16], index: 1, kind: input, shape index: {}]
  %s2 = inlined_call_operand.vmem [shape: f32[32,1], index: 2, kind: input, shape index: {}]
  %s3 = inlined_call_operand.vmem [shape: bf16[32,32], index: 3, kind: input, shape index: {}]
  %s4 = inlined_call_operand.vmem [shape: f32[32,1], index: 4, kind: input, shape index: {}]
  %s5 = inlined_call_operand.vmem [shape: f32[1,32], index: 5, kind: input, shape index: {}]
  %s6 = inlined_call_operand.<no memory space> [shape: f32[1], index: 6, kind: input, shape index: {}]
  %s7 = inlined_call_operand.hbm [shape: f32[1,256], index: 7, kind: output, shape index: {}]
  %s8 = sld [smem:[#allocation0]]
  $region61: #{tpu_custom_call.1} parent=0
    _
  %s10 = ssub.s32 1, %s8
  %s11 = scalar_select 0, %s10, %s8
  %12 = sst [smem:[#allocation2]] %s6
  $region1: #{tpu_custom_call.1} parent=0
    #allocation3 [shape = 'u8[1024]{0}', space=vmem, size = 0x400, scoped, tag = 'output window, operand 0']
    #allocation4 [shape = 's32[2]{0}', space=sflag, size = 0x8, scoped, tag = 'scoped memory for tpu_custom_call.1']
    %13 = vsyncpa [#allocation4], 0
    %s14 = scalar_lea.sflag [#allocation4], 1
    %15 = vsyncpa %s14, 0
    loop: start=0, step=1, limit=4
    $region2: #{tpu_custom_call.1} parent=1 // loop_pre_header
      _
    $region3: #{tpu_custom_call.1} parent=1 // loop_header
      %s17 = sphi 0, %s21
      %p18 = scmp.ge.s32.totalorder %s17, 4
      %s27 = sphi 0, %s29
      %s30 = sphi 0, %s27
      %s31 = sphi 0, %s30
      %s47 = sphi 0, %s31
      %s51 = sphi 0, %s51
      %s53 = sphi 0, %s51
      %s54 = sphi 0, %s53
      %s68 = sphi 0, %s54
      %s72 = sphi 0, %s72
      %s74 = sphi 0, %s72
      %s75 = sphi 0, %s74
      %s89 = sphi 0, %s75
      %s93 = sphi 0, %s93
      %s95 = sphi 0, %s93
      %s96 = sphi 0, %s95
      %s110 = sphi 0, %s96
      %s114 = sphi 0, %s114
      %s116 = sphi 0, %s114
      %s117 = sphi 0, %s116
      %s131 = sphi 0, %s117
      %s135 = sphi 0, %s135
      %s137 = sphi 0, %s135
      %s138 = sphi 0, %s137
      %s152 = sphi 0, %s138
      %s156 = sphi 0, %s156
      %s158 = sphi 0, %s156
      %s159 = sphi 0, %s158
      %s173 = sphi 0, %s159
      %s179 = sphi 0, %s181
      %s182 = sphi 0, %s179
      %s183 = sphi 0, %s182
      %s199 = sphi 0, %s183
    $region4: #{tpu_custom_call.1} parent=1 // loop_header_branch
      %20 = sbr.rel (%p18) target = $region8
    $region5: #{tpu_custom_call.1} parent=1 // loop_body
      %s22 = ssub.s32 %s17, 1
      %s23 = ssub.s32 %s17, 2
      %s24 = sadd.s32 %s17, 1
      %s25 = ssub.s32 %s17, %s24
      %p26 = scmp.eq.s32.totalorder %s25, 0
      %s28 = sadd.s32 %s27, 1
      %s29 = scalar_select %p26, %s27, %s28
      %p32 = pneg %p26
      %p33 = scmp.eq.s32.totalorder %s17, 1
      %p34 = por %p32, %p33
      %p35 = scmp.ne.s32.totalorder %s27, %s30
      %p36 = scmp.eq.s32.totalorder %s17, 0
      %p37 = por %p35, %p36
      %p38 = scmp.ne.s32.totalorder %s27, %s30
      %p39 = scmp.eq.s32.totalorder %s22, 1
      %p40 = por %p38, %p39
      %p41 = scmp.ne.s32.totalorder %s30, %s31
      %p42 = scmp.eq.s32.totalorder %s22, 0
      %p43 = por %p41, %p42
      %p44 = scmp.ne.s32.totalorder %s30, %s31
      %p45 = scmp.eq.s32.totalorder %s23, 1
      %p46 = por %p44, %p45
      %p48 = scmp.ne.s32.totalorder %s31, %s47
      %p49 = scmp.eq.s32.totalorder %s23, 0
      %p50 = por %p48, %p49
      %s52 = sadd.s32 %s51, 1
      %p55 = scmp.eq.s32.totalorder %s17, 1
      %p56 = scmp.ne.s32.totalorder %s51, %s53
      %p57 = scmp.eq.s32.totalorder %s17, 0
      %p58 = por %p56, %p57
      %p59 = scmp.ne.s32.totalorder %s51, %s53
      %p60 = scmp.eq.s32.totalorder %s22, 1
      %p61 = por %p59, %p60
      %p62 = scmp.ne.s32.totalorder %s53, %s54
      %p63 = scmp.eq.s32.totalorder %s22, 0
      %p64 = por %p62, %p63
      %p65 = scmp.ne.s32.totalorder %s53, %s54
      %p66 = scmp.eq.s32.totalorder %s23, 1
      %p67 = por %p65, %p66
      %p69 = scmp.ne.s32.totalorder %s54, %s68
      %p70 = scmp.eq.s32.totalorder %s23, 0
      %p71 = por %p69, %p70
      %s73 = sadd.s32 %s72, 1
      %p76 = scmp.eq.s32.totalorder %s17, 1
      %p77 = scmp.ne.s32.totalorder %s72, %s74
      %p78 = scmp.eq.s32.totalorder %s17, 0
      %p79 = por %p77, %p78
      %p80 = scmp.ne.s32.totalorder %s72, %s74
      %p81 = scmp.eq.s32.totalorder %s22, 1
      %p82 = por %p80, %p81
      %p83 = scmp.ne.s32.totalorder %s74, %s75
      %p84 = scmp.eq.s32.totalorder %s22, 0
      %p85 = por %p83, %p84
      %p86 = scmp.ne.s32.totalorder %s74, %s75
      %p87 = scmp.eq.s32.totalorder %s23, 1
      %p88 = por %p86, %p87
      %p90 = scmp.ne.s32.totalorder %s75, %s89
      %p91 = scmp.eq.s32.totalorder %s23, 0
      %p92 = por %p90, %p91
      %s94 = sadd.s32 %s93, 1
      %p97 = scmp.eq.s32.totalorder %s17, 1
      %p98 = scmp.ne.s32.totalorder %s93, %s95
      %p99 = scmp.eq.s32.totalorder %s17, 0
      %p100 = por %p98, %p99
      %p101 = scmp.ne.s32.totalorder %s93, %s95
      %p102 = scmp.eq.s32.totalorder %s22, 1
      %p103 = por %p101, %p102
      %p104 = scmp.ne.s32.totalorder %s95, %s96
      %p105 = scmp.eq.s32.totalorder %s22, 0
      %p106 = por %p104, %p105
      %p107 = scmp.ne.s32.totalorder %s95, %s96
      %p108 = scmp.eq.s32.totalorder %s23, 1
      %p109 = por %p107, %p108
      %p111 = scmp.ne.s32.totalorder %s96, %s110
      %p112 = scmp.eq.s32.totalorder %s23, 0
      %p113 = por %p111, %p112
      %s115 = sadd.s32 %s114, 1
      %p118 = scmp.eq.s32.totalorder %s17, 1
      %p119 = scmp.ne.s32.totalorder %s114, %s116
      %p120 = scmp.eq.s32.totalorder %s17, 0
      %p121 = por %p119, %p120
      %p122 = scmp.ne.s32.totalorder %s114, %s116
      %p123 = scmp.eq.s32.totalorder %s22, 1
      %p124 = por %p122, %p123
      %p125 = scmp.ne.s32.totalorder %s116, %s117
      %p126 = scmp.eq.s32.totalorder %s22, 0
      %p127 = por %p125, %p126
      %p128 = scmp.ne.s32.totalorder %s116, %s117
      %p129 = scmp.eq.s32.totalorder %s23, 1
      %p130 = por %p128, %p129
      %p132 = scmp.ne.s32.totalorder %s117, %s131
      %p133 = scmp.eq.s32.totalorder %s23, 0
      %p134 = por %p132, %p133
      %s136 = sadd.s32 %s135, 1
      %p139 = scmp.eq.s32.totalorder %s17, 1
      %p140 = scmp.ne.s32.totalorder %s135, %s137
      %p141 = scmp.eq.s32.totalorder %s17, 0
      %p142 = por %p140, %p141
      %p143 = scmp.ne.s32.totalorder %s135, %s137
      %p144 = scmp.eq.s32.totalorder %s22, 1
      %p145 = por %p143, %p144
      %p146 = scmp.ne.s32.totalorder %s137, %s138
      %p147 = scmp.eq.s32.totalorder %s22, 0
      %p148 = por %p146, %p147
      %p149 = scmp.ne.s32.totalorder %s137, %s138
      %p150 = scmp.eq.s32.totalorder %s23, 1
      %p151 = por %p149, %p150
      %p153 = scmp.ne.s32.totalorder %s138, %s152
      %p154 = scmp.eq.s32.totalorder %s23, 0
      %p155 = por %p153, %p154
      %s157 = sadd.s32 %s156, 1
      %p160 = scmp.eq.s32.totalorder %s17, 1
      %p161 = scmp.ne.s32.totalorder %s156, %s158
      %p162 = scmp.eq.s32.totalorder %s17, 0
      %p163 = por %p161, %p162
      %p164 = scmp.ne.s32.totalorder %s156, %s158
      %p165 = scmp.eq.s32.totalorder %s22, 1
      %p166 = por %p164, %p165
      %p167 = scmp.ne.s32.totalorder %s158, %s159
      %p168 = scmp.eq.s32.totalorder %s22, 0
      %p169 = por %p167, %p168
      %p170 = scmp.ne.s32.totalorder %s158, %s159
      %p171 = scmp.eq.s32.totalorder %s23, 1
      %p172 = por %p170, %p171
      %p174 = scmp.ne.s32.totalorder %s159, %s173
      %p175 = scmp.eq.s32.totalorder %s23, 0
      %p176 = por %p174, %p175
      %s177 = ssub.s32 %s17, %s24
      %p178 = scmp.eq.s32.totalorder %s177, 0
      %s180 = sadd.s32 %s179, 1
      %s181 = scalar_select %p178, %s179, %s180
      %p184 = pneg %p178
      %p185 = scmp.eq.s32.totalorder %s17, 1
      %p186 = por %p184, %p185
      %p187 = scmp.ne.s32.totalorder %s179, %s182
      %p188 = scmp.eq.s32.totalorder %s17, 0
      %p189 = por %p187, %p188
      %p190 = scmp.ne.s32.totalorder %s179, %s182
      %p191 = scmp.eq.s32.totalorder %s22, 1
      %p192 = por %p190, %p191
      %p193 = scmp.ne.s32.totalorder %s182, %s183
      %p194 = scmp.eq.s32.totalorder %s22, 0
      %p195 = por %p193, %p194
      %p196 = scmp.ne.s32.totalorder %s182, %s183
      %p197 = scmp.eq.s32.totalorder %s23, 1
      %p198 = por %p196, %p197
      %p200 = scmp.ne.s32.totalorder %s183, %s199
      %p201 = scmp.eq.s32.totalorder %s23, 0
      %p202 = por %p200, %p201
      %p203 = scmp.le.s32.totalorder 1, %s17
      %p204 = scmp.lt.s32.totalorder %s17, 3
      %p205 = pnand %p203, %p204
      %p206 = pneg %p205
      // Predicated region
      $region9: #{tpu_custom_call.1} parent=5 // pred_check
        _
      $region10: #{tpu_custom_call.1} parent=5 // pred_check_branch
        %208 = sbr.rel (%p205) target = $region12
      $region11: #{tpu_custom_call.1} parent=5 // pred_region
        %s209 = ssub.s32 %s17, 1
        // Predicated region
        $region13: #{tpu_custom_call.1} parent=11 // pred_check
          %p210 = pneg %p64
        $region14: #{tpu_custom_call.1} parent=11 // pred_check_branch
          %212 = sbr.rel (%p210) target = $region16
        $region15: #{tpu_custom_call.1} parent=11 // pred_region
          _
        $region16: #{tpu_custom_call.1} parent=11 // pred_fallthru
          _
        // Predicated region
        $region17: #{tpu_custom_call.1} parent=11 // pred_check
          %p213 = pneg %p85
        $region18: #{tpu_custom_call.1} parent=11 // pred_check_branch
          %215 = sbr.rel (%p213) target = $region20
        $region19: #{tpu_custom_call.1} parent=11 // pred_region
          _
        $region20: #{tpu_custom_call.1} parent=11 // pred_fallthru
          _
        // Predicated region
        $region21: #{tpu_custom_call.1} parent=11 // pred_check
          %p216 = pneg %p106
        $region22: #{tpu_custom_call.1} parent=11 // pred_check_branch
          %218 = sbr.rel (%p216) target = $region24
        $region23: #{tpu_custom_call.1} parent=11 // pred_region
          _
        $region24: #{tpu_custom_call.1} parent=11 // pred_fallthru
          _
        // Predicated region
        $region25: #{tpu_custom_call.1} parent=11 // pred_check
          %p219 = pneg %p127
        $region26: #{tpu_custom_call.1} parent=11 // pred_check_branch
          %221 = sbr.rel (%p219) target = $region28
        $region27: #{tpu_custom_call.1} parent=11 // pred_region
          _
        $region28: #{tpu_custom_call.1} parent=11 // pred_fallthru
          _
        // Predicated region
        $region29: #{tpu_custom_call.1} parent=11 // pred_check
          %p222 = pneg %p148
        $region30: #{tpu_custom_call.1} parent=11 // pred_check_branch
          %224 = sbr.rel (%p222) target = $region32
        $region31: #{tpu_custom_call.1} parent=11 // pred_region
          _
        $region32: #{tpu_custom_call.1} parent=11 // pred_fallthru
          _
        // Predicated region
        $region33: #{tpu_custom_call.1} parent=11 // pred_check
          %p225 = pneg %p169
        $region34: #{tpu_custom_call.1} parent=11 // pred_check_branch
          %227 = sbr.rel (%p225) target = $region36
        $region35: #{tpu_custom_call.1} parent=11 // pred_region
          _
        $region36: #{tpu_custom_call.1} parent=11 // pred_fallthru
          _
      $region12: #{tpu_custom_call.1} parent=5 // pred_fallthru
        _
      %p228 = scmp.lt.s32.totalorder %s17, 2
      // Predicated region
      $region37: #{tpu_custom_call.1} parent=5 // pred_check
        %p229 = pneg %p228
      $region38: #{tpu_custom_call.1} parent=5 // pred_check_branch
        %231 = sbr.rel (%p229) target = $region40
      $region39: #{tpu_custom_call.1} parent=5 // pred_region
        // Predicated region
        $region41: #{tpu_custom_call.1} parent=39 // pred_check
          %p232 = pneg %p37
        $region42: #{tpu_custom_call.1} parent=39 // pred_check_branch
          %234 = sbr.rel (%p232) target = $region44
        $region43: #{tpu_custom_call.1} parent=39 // pred_region
          %s235 = smul.u32 16, %s17
          %p236 = scmp.lt.s32.totalorder %s235, 31
          %s237 = scalar_select %p236, %s235, 31
          %s238 = smul.addr %s237, 8
          %s239 = scalar_lea.vmem %s0, %s238
          %s240 = smul.u32 16, %s17
        $region44: #{tpu_custom_call.1} parent=39 // pred_fallthru
          _
      $region40: #{tpu_custom_call.1} parent=5 // pred_fallthru
        _
      %p241 = scmp.le.s32.totalorder 1, %s17
      %p242 = scmp.lt.s32.totalorder %s17, 3
      %p243 = pnand %p241, %p242
      %p244 = pneg %p243
      // Predicated region
      $region45: #{tpu_custom_call.1} parent=5 // pred_check
        _
      $region46: #{tpu_custom_call.1} parent=5 // pred_check_branch
        %246 = sbr.rel (%p243) target = $region48
      $region47: #{tpu_custom_call.1} parent=5 // pred_region
        %s247 = ssub.s32 %s17, 1
        %s248 = smul.u32 16, %s22
        %p249 = scmp.lt.s32.totalorder %s248, 31
        %s250 = scalar_select %p249, %s248, 31
        %s251 = smul.addr %s250, 8
        %s252 = scalar_lea.vmem %s0, %s251
        %p253 = pneg %p43
        %p254 = pneg %p40
        %p255 = pneg %p64
        %p256 = pneg %p61
        %p257 = pneg %p85
        %p258 = pneg %p82
        %p259 = pneg %p106
        %p260 = pneg %p103
        %p261 = pneg %p127
        %p262 = pneg %p124
        %p263 = pneg %p148
        %p264 = pneg %p145
        %p265 = pneg %p169
        %p266 = pneg %p166
        %p267 = pneg %p195
        %p268 = pneg %p192
        %s269 = sand.u32 %s182, 1
        %s270 = scalar_lea.sflag [#allocation4], %s269
        %s271 = sand.u32 %s182, 1
        %s272 = scalar_lea.vmem [#allocation3], %s271
        %s273 = smul.u32 16, %s22
        %p274 = scmp.lt.s32.totalorder %s273, 31
        %s275 = scalar_select %p274, %s273, 31
        %s276 = smul.addr %s275, 8
        %s277 = scalar_lea.vmem %s0, %s276
        %s278 = smul.u32 16, %s22
        %v280 = vld [vmem:[%s277] sm:$0xff]
        %v281 = vld [vmem:[%s277 + $0x8] sm:$0xff]
        %v282 = vld [vmem:[%s277 + $0x10] sm:$0xff]
        %v283 = vld [vmem:[%s277 + $0x18] sm:$0xff]
        %v284 = vld [vmem:[%s277 + $0x20] sm:$0xff]
        %v285 = vld [vmem:[%s277 + $0x28] sm:$0xff]
        %v286 = vld [vmem:[%s277 + $0x30] sm:$0xff]
        %v287 = vld [vmem:[%s277 + $0x38] sm:$0xff]
        %v288 = vld [vmem:[%s277 + $0x40] sm:$0xff]
        %v289 = vld [vmem:[%s277 + $0x48] sm:$0xff]
        %v290 = vld [vmem:[%s277 + $0x50] sm:$0xff]
        %v291 = vld [vmem:[%s277 + $0x58] sm:$0xff]
        %v292 = vld [vmem:[%s277 + $0x60] sm:$0xff]
        %v293 = vld [vmem:[%s277 + $0x68] sm:$0xff]
        %v294 = vld [vmem:[%s277 + $0x70] sm:$0xff]
        %v295 = vld [vmem:[%s277 + $0x78] sm:$0xff]
        %v296 = vpack.c.bf16 %v281, %v280
        %v297 = vpack.c.bf16 %v283, %v282
        %v298 = vpack.c.bf16 %v285, %v284
        %v299 = vpack.c.bf16 %v287, %v286
        %v300 = vpack.c.bf16 %v289, %v288
        %v301 = vpack.c.bf16 %v291, %v290
        %v302 = vpack.c.bf16 %v293, %v292
        %v303 = vpack.c.bf16 %v295, %v294
        %v304 = vld [vmem:[%s1] sm:$0xf]
        %v305 = vld [vmem:[%s1 + $0x4] sm:$0xf]
        %v306 = vld [vmem:[%s1 + $0x8] sm:$0xf]
        %v307 = vld [vmem:[%s1 + $0xc] sm:$0xf]
        %v308 = vld [vmem:[%s2] sm:$0xff]
        %v309 = vld [vmem:[%s2 + $0x8] sm:$0xff]
        %v310 = vld [vmem:[%s2 + $0x10] sm:$0xff]
        %v311 = vld [vmem:[%s2 + $0x18] sm:$0xff]
        %313 = vset.pattern.permute.xlu0 0
        %314 = vperm.xlu0 %313, %v308
        %v315 = vpop.permute.xlu0 %314
        %318 = vset.pattern.permute.xlu0 0
        %319 = vperm.xlu0 %318, %v309
        %v320 = vpop.permute.xlu0 %319
        %323 = vset.pattern.permute.xlu0 0
        %324 = vperm.xlu0 %323, %v310
        %v325 = vpop.permute.xlu0 %324
        %328 = vset.pattern.permute.xlu0 0
        %329 = vperm.xlu0 %328, %v311
        %v330 = vpop.permute.xlu0 %329
        %v336 = vunpack.c.l.b16 %v304
        %v337 = vunpack.c.l.b16 %v305
        %v338 = vunpack.c.l.b16 %v306
        %v339 = vunpack.c.l.b16 %v307
        %v340 = vpack.c.b16 %v337, %v336
        %v341 = vpack.c.b16 %v339, %v338
        %vm342 = vcmask 130048
        %v344 = vsel %vm342, %v340, 0
        %v347 = vsel %vm342, %v341, 0
        %v350 = vsel %vm342, %v296, 0
        %v353 = vsel %vm342, %v297, 0
        %v356 = vsel %vm342, %v298, 0
        %v359 = vsel %vm342, %v299, 0
        %v362 = vsel %vm342, %v300, 0
        %v365 = vsel %vm342, %v301, 0
        %v368 = vsel %vm342, %v302, 0
        %v371 = vsel %vm342, %v303, 0
        %373 = vmatprep.subr.bf16.mxu0 0
        %374 = vmatpush1.bf16.xpose.msra.mxu0 %v371
        %375 = vmatprep.subr.bf16.mxu0 0
        %376 = vmatpush1.bf16.xpose.msra.mxu0 %v368
        %377 = vmatprep.subr.bf16.mxu0 0
        %378 = vmatpush1.bf16.xpose.msra.mxu0 %v365
        %379 = vmatprep.subr.bf16.mxu0 0
        %380 = vmatpush1.bf16.xpose.msra.mxu0 %v362
        %381 = vmatprep.subr.bf16.mxu0 0
        %382 = vmatpush1.bf16.xpose.msra.mxu0 %v359
        %383 = vmatprep.subr.bf16.mxu0 0
        %384 = vmatpush1.bf16.xpose.msra.mxu0 %v356
        %385 = vmatprep.subr.bf16.mxu0 0
        %386 = vmatpush1.bf16.xpose.msra.mxu0 %v353
        %387 = vmatprep.subr.bf16.mxu0 0
        %388 = vmatpush1.bf16.xpose.msra.mxu0 %v350
        %389 = vmatprep.subr.bf16.mxu0 0
        %390 = vmatpush2.bf16.xpose.msra.mxu0 0
        %391 = vmatprep.subr.bf16.mxu0 0
        %392 = vmatpush2.bf16.xpose.msra.mxu0 0
        %393 = vmatprep.subr.bf16.mxu0 0
        %394 = vmatpush2.bf16.xpose.msra.mxu0 0
        %395 = vmatprep.subr.bf16.mxu0 0
        %396 = vmatpush2.bf16.xpose.msra.mxu0 0
        %397 = vmatprep.subr.bf16.mxu0 0
        %398 = vmatpush2.bf16.xpose.msra.mxu0 0
        %399 = vmatprep.subr.bf16.mxu0 0
        %400 = vmatpush2.bf16.xpose.msra.mxu0 0
        %401 = vmatprep.subr.bf16.mxu0 0
        %402 = vmatpush2.bf16.xpose.msra.mxu0 0
        %403 = vmatprep.subr.bf16.mxu0 0
        %404 = vmatpush2.bf16.xpose.msra.mxu0 0
        %405 = vmatprep.mubr.bf16.mxu0 0
        %406 = vmatmul.mubr.bf16.gmra.mxu0 %v344
        %v407 = vpop.f32.mrf.mxu0
        %v408 = vadd.f32 %v315, %v407
        %v409 = vpop.f32.mrf.mxu0
        %v410 = vpop.f32.mrf.mxu0
        %v411 = vadd.f32 %v320, %v410
        %v412 = vpop.f32.mrf.mxu0
        %413 = vmatprep.mubr.bf16.mxu0 0
        %414 = vmatmul.mubr.bf16.gmra.mxu0 %v347
        %v415 = vpop.f32.mrf.mxu0
        %v416 = vadd.f32 %v325, %v415
        %v417 = vpop.f32.mrf.mxu0
        %v418 = vpop.f32.mrf.mxu0
        %v419 = vadd.f32 %v330, %v418
        %v420 = vpop.f32.mrf.mxu0
        %421 = vdwg.mxu0
        %v422 = vtanh.pop %v408
        %v423 = vtanh.pop %v411
        %v424 = vtanh.pop %v416
        %v425 = vtanh.pop %v419
        %v426 = vld [vmem:[%s3] sm:$0xf]
        %v427 = vld [vmem:[%s3 + $0x4] sm:$0xf]
        %v428 = vld [vmem:[%s3 + $0x8] sm:$0xf]
        %v429 = vld [vmem:[%s3 + $0xc] sm:$0xf]
        %v430 = vpack.c.bf16 %v423, %v422
        %v431 = vpack.c.bf16 %v425, %v424
        %v432 = vld [vmem:[%s4] sm:$0xff]
        %v433 = vld [vmem:[%s4 + $0x8] sm:$0xff]
        %v434 = vld [vmem:[%s4 + $0x10] sm:$0xff]
        %v435 = vld [vmem:[%s4 + $0x18] sm:$0xff]
        %437 = vset.pattern.permute.xlu0 0
        %438 = vperm.xlu0 %437, %v432
        %v439 = vpop.permute.xlu0 %438
        %442 = vset.pattern.permute.xlu0 0
        %443 = vperm.xlu0 %442, %v433
        %v444 = vpop.permute.xlu0 %443
        %447 = vset.pattern.permute.xlu0 0
        %448 = vperm.xlu0 %447, %v434
        %v449 = vpop.permute.xlu0 %448
        %452 = vset.pattern.permute.xlu0 0
        %453 = vperm.xlu0 %452, %v435
        %v454 = vpop.permute.xlu0 %453
        %v460 = vunpack.c.l.b16 %v426
        %v461 = vunpack.c.l.b16 %v427
        %v462 = vunpack.c.l.b16 %v428
        %v463 = vunpack.c.l.b16 %v429
        %v464 = vpack.c.b16 %v461, %v460
        %v465 = vpack.c.b16 %v463, %v462
        %vm466 = vcmask 261120
        %v468 = vsel %vm466, %v464, 0
        %v471 = vsel %vm466, %v465, 0
        %473 = vmatprep.subr.bf16.mxu0 0
        %474 = vmatpush1.bf16.msra.mxu0 0
        %475 = vmatprep.subr.bf16.mxu0 0
        %476 = vmatpush1.bf16.msra.mxu0 0
        %477 = vmatprep.subr.bf16.mxu0 0
        %478 = vmatpush1.bf16.msra.mxu0 0
        %479 = vmatprep.subr.bf16.mxu0 0
        %480 = vmatpush1.bf16.msra.mxu0 0
        %481 = vmatprep.subr.bf16.mxu0 0
        %482 = vmatpush1.bf16.msra.mxu0 0
        %483 = vmatprep.subr.bf16.mxu0 0
        %484 = vmatpush1.bf16.msra.mxu0 0
        %485 = vmatprep.subr.bf16.mxu0 0
        %486 = vmatpush1.bf16.msra.mxu0 %v431
        %487 = vmatprep.subr.bf16.mxu0 0
        %488 = vmatpush1.bf16.msra.mxu0 %v430
        %489 = vmatprep.subr.bf16.mxu0 0
        %490 = vmatpush2.bf16.msra.mxu0 0
        %491 = vmatprep.subr.bf16.mxu0 0
        %492 = vmatpush2.bf16.msra.mxu0 0
        %493 = vmatprep.subr.bf16.mxu0 0
        %494 = vmatpush2.bf16.msra.mxu0 0
        %495 = vmatprep.subr.bf16.mxu0 0
        %496 = vmatpush2.bf16.msra.mxu0 0
        %497 = vmatprep.subr.bf16.mxu0 0
        %498 = vmatpush2.bf16.msra.mxu0 0
        %499 = vmatprep.subr.bf16.mxu0 0
        %500 = vmatpush2.bf16.msra.mxu0 0
        %501 = vmatprep.subr.bf16.mxu0 0
        %502 = vmatpush2.bf16.msra.mxu0 0
        %503 = vmatprep.subr.bf16.mxu0 0
        %504 = vmatpush2.bf16.msra.mxu0 0
        %505 = vmatprep.mubr.bf16.mxu0 0
        %506 = vmatmul.mubr.bf16.gmra.mxu0 %v468
        %v507 = vpop.f32.mrf.mxu0
        %v508 = vadd.f32 %v439, %v507
        %v509 = vpop.f32.mrf.mxu0
        %v510 = vpop.f32.mrf.mxu0
        %v511 = vadd.f32 %v444, %v510
        %v512 = vpop.f32.mrf.mxu0
        %513 = vmatprep.mubr.bf16.mxu0 0
        %514 = vmatmul.mubr.bf16.gmra.mxu0 %v471
        %v515 = vpop.f32.mrf.mxu0
        %v516 = vadd.f32 %v449, %v515
        %v517 = vpop.f32.mrf.mxu0
        %v518 = vpop.f32.mrf.mxu0
        %v519 = vadd.f32 %v454, %v518
        %v520 = vpop.f32.mrf.mxu0
        %521 = vdwg.mxu0
        %v522 = vtanh.pop %v508
        %v523 = vtanh.pop %v511
        %v524 = vtanh.pop %v516
        %v525 = vtanh.pop %v519
        %v526 = vld [vmem:[%s5] sm:$0x1]
        %s527 = sld [smem:[#allocation2]]
        %v528 = vstv %s527
        %v530 = vsel %vm466, %v526, 0
        %532 = vmatprep.subr.mxu0 0.0
        %533 = vmatpush1.msra.mxu0 0.0
        %534 = vmatprep.subr.mxu0 0.0
        %535 = vmatpush1.msra.mxu0 0.0
        %536 = vmatprep.subr.mxu0 0.0
        %537 = vmatpush1.msra.mxu0 0.0
        %538 = vmatprep.subr.mxu0 0.0
        %539 = vmatpush1.msra.mxu0 0.0
        %540 = vmatprep.subr.mxu0 0.0
        %541 = vmatpush1.msra.mxu0 0.0
        %542 = vmatprep.subr.mxu0 0.0
        %543 = vmatpush1.msra.mxu0 0.0
        %544 = vmatprep.subr.mxu0 0.0
        %545 = vmatpush1.msra.mxu0 0.0
        %546 = vmatprep.subr.mxu0 0.0
        %547 = vmatpush1.msra.mxu0 0.0
        %548 = vmatprep.subr.mxu0 0.0
        %549 = vmatpush1.msra.mxu0 0.0
        %550 = vmatprep.subr.mxu0 0.0
        %551 = vmatpush1.msra.mxu0 0.0
        %552 = vmatprep.subr.mxu0 0.0
        %553 = vmatpush1.msra.mxu0 0.0
        %554 = vmatprep.subr.mxu0 0.0
        %555 = vmatpush1.msra.mxu0 0.0
        %556 = vmatprep.subr.mxu0 0.0
        %557 = vmatpush1.msra.mxu0 %v525
        %558 = vmatprep.subr.mxu0 0.0
        %559 = vmatpush1.msra.mxu0 %v524
        %560 = vmatprep.subr.mxu0 0.0
        %561 = vmatpush1.msra.mxu0 %v523
        %562 = vmatprep.subr.mxu0 0.0
        %563 = vmatpush1.msra.mxu0 %v522
        %564 = vmatprep.subr.mxu0 0.0
        %565 = vmatpush2.msra.mxu0 0.0
        %566 = vmatprep.subr.mxu0 0.0
        %567 = vmatpush2.msra.mxu0 0.0
        %568 = vmatprep.subr.mxu0 0.0
        %569 = vmatpush2.msra.mxu0 0.0
        %570 = vmatprep.subr.mxu0 0.0
        %571 = vmatpush2.msra.mxu0 0.0
        %572 = vmatprep.subr.mxu0 0.0
        %573 = vmatpush2.msra.mxu0 0.0
        %574 = vmatprep.subr.mxu0 0.0
        %575 = vmatpush2.msra.mxu0 0.0
        %576 = vmatprep.subr.mxu0 0.0
        %577 = vmatpush2.msra.mxu0 0.0
        %578 = vmatprep.subr.mxu0 0.0
        %579 = vmatpush2.msra.mxu0 0.0
        %580 = vmatprep.subr.mxu0 0.0
        %581 = vmatpush2.msra.mxu0 0.0
        %582 = vmatprep.subr.mxu0 0.0
        %583 = vmatpush2.msra.mxu0 0.0
        %584 = vmatprep.subr.mxu0 0.0
        %585 = vmatpush2.msra.mxu0 0.0
        %586 = vmatprep.subr.mxu0 0.0
        %587 = vmatpush2.msra.mxu0 0.0
        %588 = vmatprep.subr.mxu0 0.0
        %589 = vmatpush2.msra.mxu0 0.0
        %590 = vmatprep.subr.mxu0 0.0
        %591 = vmatpush2.msra.mxu0 0.0
        %592 = vmatprep.subr.mxu0 0.0
        %593 = vmatpush2.msra.mxu0 0.0
        %594 = vmatprep.subr.mxu0 0.0
        %595 = vmatpush2.msra.mxu0 0.0
        %596 = vmatprep.mubr.f32.mxu0 0.0
        %597 = vmatmul.mubr.f32.gmra.mxu0 %v530
        %v598 = vpop.f32.mrf.mxu0
        %v599 = vadd.f32 %v528, %v598
        %v600 = vpop.f32.mrf.mxu0
        %601 = vdwg.mxu0
        %602 = vst [vmem:[%s272] sm:$0x1] %v599
        %s603 = sand.u32 %s182, 1
        %s604 = scalar_lea.sflag [#allocation4], %s603
        %s605 = sand.u32 %s182, 1
        %s606 = scalar_lea.vmem [#allocation3], %s605
        // Predicated region
        $region49: #{tpu_custom_call.1} parent=47 // pred_check
          %p607 = pneg %p192
        $region50: #{tpu_custom_call.1} parent=47 // pred_check_branch
          %609 = sbr.rel (%p607) target = $region52
        $region51: #{tpu_custom_call.1} parent=47 // pred_region
          %s611 = ssub.s32 16, 16
          %612 = vsyncadd %s604, %s611
          %s613 = smul.addr %s22, 16
          %s614 = scalar_lea.hbm %s7, %s613
          %s616 = sshll.u32 %s606, 4
          %s617 = int_to_ptr.vmem [resolvable:$true] %s616
          %619 = dma.vmem_to_hbm [thread:$0]  %s617, 16, %s614, %s604
        $region52: #{tpu_custom_call.1} parent=47 // pred_fallthru
          _
      $region48: #{tpu_custom_call.1} parent=5 // pred_fallthru
        _
      %p620 = scmp.le.s32.totalorder 2, %s17
      // Predicated region
      $region53: #{tpu_custom_call.1} parent=5 // pred_check
        %p621 = pneg %p620
      $region54: #{tpu_custom_call.1} parent=5 // pred_check_branch
        %623 = sbr.rel (%p621) target = $region56
      $region55: #{tpu_custom_call.1} parent=5 // pred_region
        %s624 = ssub.s32 %s17, 2
        // Predicated region
        $region57: #{tpu_custom_call.1} parent=55 // pred_check
          %p625 = pneg %p198
        $region58: #{tpu_custom_call.1} parent=55 // pred_check_branch
          %627 = sbr.rel (%p625) target = $region60
        $region59: #{tpu_custom_call.1} parent=55 // pred_region
          %s628 = sand.u32 %s183, 1
          %s629 = scalar_lea.sflag [#allocation4], %s628
          %s630 = sand.u32 %s183, 1
          %s631 = scalar_lea.vmem [#allocation3], %s630
          %632 = dma.done %s629, 16
        $region60: #{tpu_custom_call.1} parent=55 // pred_fallthru
          _
      $region56: #{tpu_custom_call.1} parent=5 // pred_fallthru
        _
    $region6: #{tpu_custom_call.1} parent=1 // loop_footer
      %s21 = sadd.s32 1, %s17
    $region7: #{tpu_custom_call.1} parent=1 // loop_footer_branch
      %16 = sbr.rel target = $region3
    $region8: #{tpu_custom_call.1} parent=1 // loop_exit
      _
    %633 = vsyncpa [#allocation4], 1
    %s634 = scalar_lea.sflag [#allocation4], 1
    %635 = vsyncpa %s634, 1

</llo_original>
